<compile_context>
chip_gen: v7x
topology: tpu7x:2x2x1
jax: 0.10.0
libtpu: 0.0.40
codegen_flags: <defaults>
</compile_context>

<pallas_src>
import jax
import jax.numpy as jnp
from jax.experimental import pallas as pl
from jax.experimental.pallas import tpu as pltpu

LN_EPS = 1e-5                 # nn.LayerNorm default eps
INFONCE_TEMPERATURE = 0.1     # InfoNCE() default temperature


# -----------------------------------------------------------------------------
# Fused Pallas kernel: ProjectionHead(audio) + ProjectionHead(text) + InfoNCE
# -----------------------------------------------------------------------------
def _projection_head(x, w1, b1, w2, b2, gamma, beta):
    """projected = x@W1+b1; y = relu(projected)@W2+b2; y += projected; LN."""
    projected = jnp.dot(x, w1, preferred_element_type=jnp.float32) + b1
    h = jnp.maximum(projected, 0.0)                      # ReLU
    y = jnp.dot(h, w2, preferred_element_type=jnp.float32) + b2
    # TODO(synk): nn.Dropout(p=0.1) is identity in eval mode; training-mode
    # stochastic masking (pltpu.prng_*) is not implemented in the kernel.
    y = y + projected                                    # residual
    mean = jnp.mean(y, axis=-1, keepdims=True)
    var = jnp.mean((y - mean) ** 2, axis=-1, keepdims=True)
    y_hat = (y - mean) * jax.lax.rsqrt(var + LN_EPS)     # rsqrt -> EUP slot
    return y_hat * gamma + beta


def clip_fused_kernel(a_feat_ref, t_feat_ref,
                      a_w1_ref, a_b1_ref, a_w2_ref, a_b2_ref, a_g_ref, a_be_ref,
                      t_w1_ref, t_b1_ref, t_w2_ref, t_b2_ref, t_g_ref, t_be_ref,
                      a_emb_ref, t_emb_ref, loss_ref):
    # --- projection heads (both run on data already resident in VMEM) -------
    a_emb = _projection_head(a_feat_ref[...],
                             a_w1_ref[...], a_b1_ref[...],
                             a_w2_ref[...], a_b2_ref[...],
                             a_g_ref[...], a_be_ref[...])
    t_emb = _projection_head(t_feat_ref[...],
                             t_w1_ref[...], t_b1_ref[...],
                             t_w2_ref[...], t_b2_ref[...],
                             t_g_ref[...], t_be_ref[...])
    a_emb_ref[...] = a_emb
    t_emb_ref[...] = t_emb

    # --- InfoNCE (query = text, positive keys = audio; single direction, ----
    #     matching info_nce.InfoNCE() defaults) ------------------------------
    tn = t_emb * jax.lax.rsqrt(jnp.sum(t_emb * t_emb, axis=-1, keepdims=True))
    an = a_emb * jax.lax.rsqrt(jnp.sum(a_emb * a_emb, axis=-1, keepdims=True))
    inv_t = 1.0 / INFONCE_TEMPERATURE
    # tn @ an^T without materializing a transpose: contract last axes of both.
    logits = jax.lax.dot_general(
        tn, an, dimension_numbers=(((1,), (1,)), ((), ())),
        preferred_element_type=jnp.float32) * inv_t
    # Positive (diagonal) logits computed directly — no BxB iota/mask/reduce.
    pos = jnp.sum(tn * an, axis=-1, keepdims=True) * inv_t
    m = jnp.max(logits, axis=-1, keepdims=True)
    lse = m + jnp.log(jnp.sum(jnp.exp(logits - m), axis=-1, keepdims=True))
    loss_ref[0, 0] = jnp.mean(lse - pos)


def base_clip_fused(audio_features, text_features, audio_proj, text_proj):
    """audio_features: [B, Ea] f32, text_features: [B, Et] f32.

    Returns (loss_scalar, audio_embeddings [B,P], text_embeddings [B,P]).
    Single fused pallas_call: no grid (everything is one VMEM-resident tile).
    """
    B, Ea = audio_features.shape
    _, Et = text_features.shape
    P = audio_proj[0].shape[1]

    flops = (2 * B * Ea * P + 2 * B * P * P            # audio projection head
             + 2 * B * Et * P + 2 * B * P * P          # text projection head
             + 2 * B * B * P)                          # similarity logits
    transcendentals = B * B + 6 * B                    # exp + log/rsqrt
    bytes_accessed = 4 * (audio_features.size + text_features.size
                          + sum(int(p.size) for p in audio_proj)
                          + sum(int(p.size) for p in text_proj)
                          + 2 * B * P + 1)

    vmem = lambda: pl.BlockSpec(memory_space=pltpu.MemorySpace.VMEM)
    a_emb, t_emb, loss = pl.pallas_call(
        clip_fused_kernel,
        out_shape=(jax.ShapeDtypeStruct((B, P), jnp.float32),
                   jax.ShapeDtypeStruct((B, P), jnp.float32),
                   jax.ShapeDtypeStruct((1, 1), jnp.float32)),
        in_specs=[vmem() for _ in range(14)],
        out_specs=(vmem(), vmem(),
                   pl.BlockSpec(memory_space=pltpu.MemorySpace.SMEM)),
        cost_estimate=pl.CostEstimate(flops=flops,
                                      transcendentals=transcendentals,
                                      bytes_accessed=bytes_accessed),
    )(audio_features, text_features, *audio_proj, *text_proj)
    return loss[0, 0], a_emb, t_emb


# -----------------------------------------------------------------------------
# Encoder stubs (plain-JAX glue).
# TODO(synk): the real audio encoder (ResNet-50) and text encoder (RoBERTa)
# are external pretrained backbones and are not translated; they are replaced
# with deterministic linear / embedding stubs that produce features of the
# same shape contract ([B, image_embedding_size] and [B, text_embedding_size]).
# -----------------------------------------------------------------------------
def audio_encoder_stub(audio_specs, w_audio):
    B = audio_specs.shape[0]
    flat = audio_specs.reshape(B, -1).astype(jnp.float32)   # NCHW -> [B, C*H*W]
    return flat @ w_audio                                    # [B, image_emb]


def text_encoder_stub(input_ids, attention_mask, embed_table):
    emb = embed_table[input_ids]                             # [B, T, text_emb]
    mask = attention_mask.astype(jnp.float32)[..., None]     # [B, T, 1]
    summed = jnp.sum(emb * mask, axis=1)
    count = jnp.maximum(jnp.sum(mask, axis=1), 1.0)
    return summed / count                                    # [B, text_emb]


# -----------------------------------------------------------------------------
# Parameter init (deterministic, synthetic) and full forward.
# -----------------------------------------------------------------------------
def init_projection_head(key, embedding_dim, projection_dim=128):
    k1, k2, k3, k4 = jax.random.split(key, 4)
    scale1 = 1.0 / jnp.sqrt(embedding_dim)
    scale2 = 1.0 / jnp.sqrt(projection_dim)
    w1 = jax.random.uniform(k1, (embedding_dim, projection_dim),
                            jnp.float32, -scale1, scale1)
    b1 = jax.random.uniform(k2, (1, projection_dim), jnp.float32, -scale1, scale1)
    w2 = jax.random.uniform(k3, (projection_dim, projection_dim),
                            jnp.float32, -scale2, scale2)
    b2 = jax.random.uniform(k4, (1, projection_dim), jnp.float32, -scale2, scale2)
    gamma = jnp.ones((1, projection_dim), jnp.float32)
    beta = jnp.zeros((1, projection_dim), jnp.float32)
    return (w1, b1, w2, b2, gamma, beta)


def base_clip_forward(batch, params):
    audio_specs, input_ids, attention_mask = batch
    input_ids = input_ids.reshape(-1, input_ids.shape[-1])
    attention_mask = attention_mask.reshape(-1, attention_mask.shape[-1])

    text_features = text_encoder_stub(input_ids, attention_mask,
                                      params["text_embed_table"])
    processed_audio = audio_encoder_stub(audio_specs, params["w_audio"])

    batch_loss, audio_embeddings, text_embeddings = base_clip_fused(
        processed_audio, text_features,
        params["audio_proj"], params["text_proj"])
    return batch_loss, audio_embeddings, text_embeddings


if __name__ == "__main__":
    # Small shapes consistent with the module's forward.
    B, C, H, W = 8, 3, 16, 16
    SEQ = 10
    VOCAB = 64
    IMAGE_EMB = 32     # stands in for image_embedding_size=1000
    TEXT_EMB = 64      # stands in for text_embedding_size=768
    PROJ_DIM = 128     # projection_dim default (lane-dense: one full vreg row)

    key = jax.random.PRNGKey(0)
    k_spec, k_ids, k_waudio, k_embed, k_aproj, k_tproj = jax.random.split(key, 6)

    audio_specs = jax.random.normal(k_spec, (B, C, H, W), jnp.float32)
    input_ids = jax.random.randint(k_ids, (B, SEQ), 0, VOCAB, jnp.int32)
    attention_mask = jnp.ones((B, SEQ), jnp.int32)

    params = {
        "w_audio": jax.random.normal(k_waudio, (C * H * W, IMAGE_EMB),
                                     jnp.float32) * 0.02,
        "text_embed_table": jax.random.normal(k_embed, (VOCAB, TEXT_EMB),
                                              jnp.float32) * 0.02,
        "audio_proj": init_projection_head(k_aproj, IMAGE_EMB, PROJ_DIM),
        "text_proj": init_projection_head(k_tproj, TEXT_EMB, PROJ_DIM),
    }

    loss, audio_emb, text_emb = base_clip_forward(
        (audio_specs, input_ids, attention_mask), params)
    jax.block_until_ready((loss, audio_emb, text_emb))

    assert audio_emb.shape == (B, PROJ_DIM)
    assert text_emb.shape == (B, PROJ_DIM)
    assert loss.shape == ()
    assert bool(jnp.isfinite(loss))
    print("KERNEL_OK")
</pallas_src>

<mosaic_0001>
module attributes {stable_mosaic.version = 11 : i64} {
  func.func @clip_fused_kernel(%arg0: memref<8x32xf32, #tpu.memory_space<vmem>>, %arg1: memref<8x64xf32, #tpu.memory_space<vmem>>, %arg2: memref<32x128xf32, #tpu.memory_space<vmem>>, %arg3: memref<1x128xf32, #tpu.memory_space<vmem>>, %arg4: memref<128x128xf32, #tpu.memory_space<vmem>>, %arg5: memref<1x128xf32, #tpu.memory_space<vmem>>, %arg6: memref<1x128xf32, #tpu.memory_space<vmem>>, %arg7: memref<1x128xf32, #tpu.memory_space<vmem>>, %arg8: memref<64x128xf32, #tpu.memory_space<vmem>>, %arg9: memref<1x128xf32, #tpu.memory_space<vmem>>, %arg10: memref<128x128xf32, #tpu.memory_space<vmem>>, %arg11: memref<1x128xf32, #tpu.memory_space<vmem>>, %arg12: memref<1x128xf32, #tpu.memory_space<vmem>>, %arg13: memref<1x128xf32, #tpu.memory_space<vmem>>, %arg14: memref<8x128xf32, #tpu.memory_space<vmem>>, %arg15: memref<8x128xf32, #tpu.memory_space<vmem>>, %arg16: memref<1x1xf32, #tpu.memory_space<smem>>) attributes {dimension_semantics = [], scalar_prefetch = 0 : i64, scratch_operands = 0 : i64, tpu.core_type = #tpu.core_type<tc>} {
    %c0 = arith.constant 0 : index
    %c0_0 = arith.constant 0 : index
    %0 = vector.load %arg0[%c0, %c0_0] : memref<8x32xf32, #tpu.memory_space<vmem>>, vector<8x32xf32>
    %c0_1 = arith.constant 0 : index
    %c0_2 = arith.constant 0 : index
    %1 = vector.load %arg2[%c0_1, %c0_2] : memref<32x128xf32, #tpu.memory_space<vmem>>, vector<32x128xf32>
    %c0_3 = arith.constant 0 : index
    %c0_4 = arith.constant 0 : index
    %2 = vector.load %arg3[%c0_3, %c0_4] : memref<1x128xf32, #tpu.memory_space<vmem>>, vector<1x128xf32>
    %c0_5 = arith.constant 0 : index
    %c0_6 = arith.constant 0 : index
    %3 = vector.load %arg4[%c0_5, %c0_6] : memref<128x128xf32, #tpu.memory_space<vmem>>, vector<128x128xf32>
    %c0_7 = arith.constant 0 : index
    %c0_8 = arith.constant 0 : index
    %4 = vector.load %arg5[%c0_7, %c0_8] : memref<1x128xf32, #tpu.memory_space<vmem>>, vector<1x128xf32>
    %c0_9 = arith.constant 0 : index
    %c0_10 = arith.constant 0 : index
    %5 = vector.load %arg6[%c0_9, %c0_10] : memref<1x128xf32, #tpu.memory_space<vmem>>, vector<1x128xf32>
    %c0_11 = arith.constant 0 : index
    %c0_12 = arith.constant 0 : index
    %6 = vector.load %arg7[%c0_11, %c0_12] : memref<1x128xf32, #tpu.memory_space<vmem>>, vector<1x128xf32>
    %cst = arith.constant dense<0.000000e+00> : vector<8x128xf32>
    %7 = tpu.matmul %0, %1, %cst {dimension_numbers = #tpu.dot_dimension_numbers<[1], [0], [0], [1], [0, 0, 1, 1], [], []>} : vector<8x32xf32>, vector<32x128xf32>, vector<8x128xf32> -> vector<8x128xf32>
    %8 = vector.broadcast %2 : vector<1x128xf32> to vector<8x128xf32>
    %9 = arith.addf %7, %8 : vector<8x128xf32>
    %cst_13 = arith.constant 0.000000e+00 : f32
    %10 = vector.broadcast %cst_13 : f32 to vector<8x128xf32>
    %11 = arith.maximumf %9, %10 : vector<8x128xf32>
    %cst_14 = arith.constant dense<0.000000e+00> : vector<8x128xf32>
    %12 = tpu.matmul %11, %3, %cst_14 {dimension_numbers = #tpu.dot_dimension_numbers<[1], [0], [0], [1], [0, 0, 1, 1], [], []>} : vector<8x128xf32>, vector<128x128xf32>, vector<8x128xf32> -> vector<8x128xf32>
    %13 = vector.broadcast %4 : vector<1x128xf32> to vector<8x128xf32>
    %14 = arith.addf %12, %13 : vector<8x128xf32>
    %15 = arith.addf %14, %9 : vector<8x128xf32>
    %cst_15 = arith.constant dense<0.000000e+00> : vector<8xf32>
    %16 = vector.multi_reduction <add>, %15, %cst_15 [1] : vector<8x128xf32> to vector<8xf32>
    %17 = vector.shape_cast %16 : vector<8xf32> to vector<8x1xf32>
    %cst_16 = arith.constant 1.280000e+02 : f32
    %18 = vector.broadcast %cst_16 : f32 to vector<8x1xf32>
    %19 = arith.divf %17, %18 : vector<8x1xf32>
    %20 = vector.broadcast %19 : vector<8x1xf32> to vector<8x128xf32>
    %21 = arith.subf %15, %20 : vector<8x128xf32>
    %22 = arith.mulf %21, %21 : vector<8x128xf32>
    %cst_17 = arith.constant dense<0.000000e+00> : vector<8xf32>
    %23 = vector.multi_reduction <add>, %22, %cst_17 [1] : vector<8x128xf32> to vector<8xf32>
    %24 = vector.shape_cast %23 : vector<8xf32> to vector<8x1xf32>
    %cst_18 = arith.constant 1.280000e+02 : f32
    %25 = vector.broadcast %cst_18 : f32 to vector<8x1xf32>
    %26 = arith.divf %24, %25 : vector<8x1xf32>
    %27 = vector.broadcast %19 : vector<8x1xf32> to vector<8x128xf32>
    %28 = arith.subf %15, %27 : vector<8x128xf32>
    %cst_19 = arith.constant 9.99999974E-6 : f32
    %29 = vector.broadcast %cst_19 : f32 to vector<8x1xf32>
    %30 = arith.addf %26, %29 : vector<8x1xf32>
    %31 = math.rsqrt %30 : vector<8x1xf32>
    %32 = vector.broadcast %31 : vector<8x1xf32> to vector<8x128xf32>
    %33 = arith.mulf %28, %32 : vector<8x128xf32>
    %34 = vector.broadcast %5 : vector<1x128xf32> to vector<8x128xf32>
    %35 = arith.mulf %33, %34 : vector<8x128xf32>
    %36 = vector.broadcast %6 : vector<1x128xf32> to vector<8x128xf32>
    %37 = arith.addf %35, %36 : vector<8x128xf32>
    %c0_20 = arith.constant 0 : index
    %c0_21 = arith.constant 0 : index
    %38 = vector.load %arg1[%c0_20, %c0_21] : memref<8x64xf32, #tpu.memory_space<vmem>>, vector<8x64xf32>
    %c0_22 = arith.constant 0 : index
    %c0_23 = arith.constant 0 : index
    %39 = vector.load %arg8[%c0_22, %c0_23] : memref<64x128xf32, #tpu.memory_space<vmem>>, vector<64x128xf32>
    %c0_24 = arith.constant 0 : index
    %c0_25 = arith.constant 0 : index
    %40 = vector.load %arg9[%c0_24, %c0_25] : memref<1x128xf32, #tpu.memory_space<vmem>>, vector<1x128xf32>
    %c0_26 = arith.constant 0 : index
    %c0_27 = arith.constant 0 : index
    %41 = vector.load %arg10[%c0_26, %c0_27] : memref<128x128xf32, #tpu.memory_space<vmem>>, vector<128x128xf32>
    %c0_28 = arith.constant 0 : index
    %c0_29 = arith.constant 0 : index
    %42 = vector.load %arg11[%c0_28, %c0_29] : memref<1x128xf32, #tpu.memory_space<vmem>>, vector<1x128xf32>
    %c0_30 = arith.constant 0 : index
    %c0_31 = arith.constant 0 : index
    %43 = vector.load %arg12[%c0_30, %c0_31] : memref<1x128xf32, #tpu.memory_space<vmem>>, vector<1x128xf32>
    %c0_32 = arith.constant 0 : index
    %c0_33 = arith.constant 0 : index
    %44 = vector.load %arg13[%c0_32, %c0_33] : memref<1x128xf32, #tpu.memory_space<vmem>>, vector<1x128xf32>
    %cst_34 = arith.constant dense<0.000000e+00> : vector<8x128xf32>
    %45 = tpu.matmul %38, %39, %cst_34 {dimension_numbers = #tpu.dot_dimension_numbers<[1], [0], [0], [1], [0, 0, 1, 1], [], []>} : vector<8x64xf32>, vector<64x128xf32>, vector<8x128xf32> -> vector<8x128xf32>
    %46 = vector.broadcast %40 : vector<1x128xf32> to vector<8x128xf32>
    %47 = arith.addf %45, %46 : vector<8x128xf32>
    %cst_35 = arith.constant 0.000000e+00 : f32
    %48 = vector.broadcast %cst_35 : f32 to vector<8x128xf32>
    %49 = arith.maximumf %47, %48 : vector<8x128xf32>
    %cst_36 = arith.constant dense<0.000000e+00> : vector<8x128xf32>
    %50 = tpu.matmul %49, %41, %cst_36 {dimension_numbers = #tpu.dot_dimension_numbers<[1], [0], [0], [1], [0, 0, 1, 1], [], []>} : vector<8x128xf32>, vector<128x128xf32>, vector<8x128xf32> -> vector<8x128xf32>
    %51 = vector.broadcast %42 : vector<1x128xf32> to vector<8x128xf32>
    %52 = arith.addf %50, %51 : vector<8x128xf32>
    %53 = arith.addf %52, %47 : vector<8x128xf32>
    %cst_37 = arith.constant dense<0.000000e+00> : vector<8xf32>
    %54 = vector.multi_reduction <add>, %53, %cst_37 [1] : vector<8x128xf32> to vector<8xf32>
    %55 = vector.shape_cast %54 : vector<8xf32> to vector<8x1xf32>
    %cst_38 = arith.constant 1.280000e+02 : f32
    %56 = vector.broadcast %cst_38 : f32 to vector<8x1xf32>
    %57 = arith.divf %55, %56 : vector<8x1xf32>
    %58 = vector.broadcast %57 : vector<8x1xf32> to vector<8x128xf32>
    %59 = arith.subf %53, %58 : vector<8x128xf32>
    %60 = arith.mulf %59, %59 : vector<8x128xf32>
    %cst_39 = arith.constant dense<0.000000e+00> : vector<8xf32>
    %61 = vector.multi_reduction <add>, %60, %cst_39 [1] : vector<8x128xf32> to vector<8xf32>
    %62 = vector.shape_cast %61 : vector<8xf32> to vector<8x1xf32>
    %cst_40 = arith.constant 1.280000e+02 : f32
    %63 = vector.broadcast %cst_40 : f32 to vector<8x1xf32>
    %64 = arith.divf %62, %63 : vector<8x1xf32>
    %65 = vector.broadcast %57 : vector<8x1xf32> to vector<8x128xf32>
    %66 = arith.subf %53, %65 : vector<8x128xf32>
    %cst_41 = arith.constant 9.99999974E-6 : f32
    %67 = vector.broadcast %cst_41 : f32 to vector<8x1xf32>
    %68 = arith.addf %64, %67 : vector<8x1xf32>
    %69 = math.rsqrt %68 : vector<8x1xf32>
    %70 = vector.broadcast %69 : vector<8x1xf32> to vector<8x128xf32>
    %71 = arith.mulf %66, %70 : vector<8x128xf32>
    %72 = vector.broadcast %43 : vector<1x128xf32> to vector<8x128xf32>
    %73 = arith.mulf %71, %72 : vector<8x128xf32>
    %74 = vector.broadcast %44 : vector<1x128xf32> to vector<8x128xf32>
    %75 = arith.addf %73, %74 : vector<8x128xf32>
    %c0_42 = arith.constant 0 : index
    %c0_43 = arith.constant 0 : index
    %76 = vector.load %arg14[%c0_42, %c0_43] : memref<8x128xf32, #tpu.memory_space<vmem>>, vector<8x128xf32>
    tpu.vector_store %arg14[%c0_42, %c0_43], %37 {strides = array<i32>} : memref<8x128xf32, #tpu.memory_space<vmem>>, vector<8x128xf32>,
    %c0_44 = arith.constant 0 : index
    %c0_45 = arith.constant 0 : index
    %77 = vector.load %arg15[%c0_44, %c0_45] : memref<8x128xf32, #tpu.memory_space<vmem>>, vector<8x128xf32>
    tpu.vector_store %arg15[%c0_44, %c0_45], %75 {strides = array<i32>} : memref<8x128xf32, #tpu.memory_space<vmem>>, vector<8x128xf32>,
    %78 = arith.mulf %75, %75 : vector<8x128xf32>
    %cst_46 = arith.constant dense<0.000000e+00> : vector<8xf32>
    %79 = vector.multi_reduction <add>, %78, %cst_46 [1] : vector<8x128xf32> to vector<8xf32>
    %80 = vector.shape_cast %79 : vector<8xf32> to vector<8x1xf32>
    %81 = math.rsqrt %80 : vector<8x1xf32>
    %82 = vector.broadcast %81 : vector<8x1xf32> to vector<8x128xf32>
    %83 = arith.mulf %75, %82 : vector<8x128xf32>
    %84 = arith.mulf %37, %37 : vector<8x128xf32>
    %cst_47 = arith.constant dense<0.000000e+00> : vector<8xf32>
    %85 = vector.multi_reduction <add>, %84, %cst_47 [1] : vector<8x128xf32> to vector<8xf32>
    %86 = vector.shape_cast %85 : vector<8xf32> to vector<8x1xf32>
    %87 = math.rsqrt %86 : vector<8x1xf32>
    %88 = vector.broadcast %87 : vector<8x1xf32> to vector<8x128xf32>
    %89 = arith.mulf %37, %88 : vector<8x128xf32>
    %cst_48 = arith.constant dense<0.000000e+00> : vector<8x8xf32>
    %90 = tpu.matmul %83, %89, %cst_48 {dimension_numbers = #tpu.dot_dimension_numbers<[1], [1], [0], [0], [0, 0, 1, 0], [], []>} : vector<8x128xf32>, vector<8x128xf32>, vector<8x8xf32> -> vector<8x8xf32>
    %cst_49 = arith.constant 1.000000e+01 : f32
    %91 = vector.broadcast %cst_49 : f32 to vector<8x8xf32>
    %92 = arith.mulf %90, %91 : vector<8x8xf32>
    %93 = arith.mulf %83, %89 : vector<8x128xf32>
    %cst_50 = arith.constant dense<0.000000e+00> : vector<8xf32>
    %94 = vector.multi_reduction <add>, %93, %cst_50 [1] : vector<8x128xf32> to vector<8xf32>
    %95 = vector.shape_cast %94 : vector<8xf32> to vector<8x1xf32>
    %cst_51 = arith.constant 1.000000e+01 : f32
    %96 = vector.broadcast %cst_51 : f32 to vector<8x1xf32>
    %97 = arith.mulf %95, %96 : vector<8x1xf32>
    %cst_52 = arith.constant dense<0xFF800000> : vector<8xf32>
    %98 = vector.multi_reduction <maximumf>, %92, %cst_52 [1] : vector<8x8xf32> to vector<8xf32>
    %99 = vector.shape_cast %98 : vector<8xf32> to vector<8x1xf32>
    %100 = vector.broadcast %99 : vector<8x1xf32> to vector<8x8xf32>
    %101 = arith.subf %92, %100 : vector<8x8xf32>
    %102 = math.exp %101 : vector<8x8xf32>
    %cst_53 = arith.constant dense<0.000000e+00> : vector<8xf32>
    %103 = vector.multi_reduction <add>, %102, %cst_53 [1] : vector<8x8xf32> to vector<8xf32>
    %104 = vector.shape_cast %103 : vector<8xf32> to vector<8x1xf32>
    %105 = math.log %104 : vector<8x1xf32>
    %106 = arith.addf %99, %105 : vector<8x1xf32>
    %107 = arith.subf %106, %97 : vector<8x1xf32>
    %108 = vector.shape_cast %107 : vector<8x1xf32> to vector<1x8x1xf32>
    %cst_54 = arith.constant dense<0.000000e+00> : vector<1xf32>
    %109 = vector.multi_reduction <add>, %108, %cst_54 [1, 2] : vector<1x8x1xf32> to vector<1xf32>
    %110 = vector.shape_cast %109 : vector<1xf32> to vector<1x1x1xf32>
    %111 = vector.extract %110[0, 0, 0] : f32 from vector<1x1x1xf32>
    %cst_55 = arith.constant 8.000000e+00 : f32
    %112 = arith.divf %111, %cst_55 : f32
    %c0_56 = arith.constant 0 : index
    %c0_57 = arith.constant 0 : index
    %113 = memref.load %arg16[%c0_56, %c0_57] : memref<1x1xf32, #tpu.memory_space<smem>>
    memref.store %112, %arg16[%c0_56, %c0_57] : memref<1x1xf32, #tpu.memory_space<smem>>
    return
  }
}

</mosaic_0001>

<llo_original>
// kernel: tpu_custom_call.1
$region0: #{tpu_custom_call.1}
  #allocation0 [shape = 'u32[]', space=smem, size = 0x4, offset = 0x4, fixed_abs, tag = 'smem constant byte address 0x4 - core index']
  #allocation1 [shape = 'u32[144,128]{1,0:T(1,128)}', space=vmem, size = 0x12000, scoped, tag = 'internal scratch']
  %s0 = inlined_call_operand.hbm [shape: f32[8,32], index: 0, kind: input, shape index: {}]
  %s1 = inlined_call_operand.hbm [shape: f32[8,64], index: 1, kind: input, shape index: {}]
  %s2 = inlined_call_operand.hbm [shape: f32[32,128], index: 2, kind: input, shape index: {}]
  %s3 = inlined_call_operand.vmem [shape: f32[1,128], index: 3, kind: input, shape index: {}]
  %s4 = inlined_call_operand.hbm [shape: f32[128,128], index: 4, kind: input, shape index: {}]
  %s5 = inlined_call_operand.vmem [shape: f32[1,128], index: 5, kind: input, shape index: {}]
  %s6 = inlined_call_operand.vmem [shape: f32[1,128], index: 6, kind: input, shape index: {}]
  %s7 = inlined_call_operand.vmem [shape: f32[1,128], index: 7, kind: input, shape index: {}]
  %s8 = inlined_call_operand.hbm [shape: f32[64,128], index: 8, kind: input, shape index: {}]
  %s9 = inlined_call_operand.vmem [shape: f32[1,128], index: 9, kind: input, shape index: {}]
  %s10 = inlined_call_operand.hbm [shape: f32[128,128], index: 10, kind: input, shape index: {}]
  %s11 = inlined_call_operand.vmem [shape: f32[1,128], index: 11, kind: input, shape index: {}]
  %s12 = inlined_call_operand.vmem [shape: f32[1,128], index: 12, kind: input, shape index: {}]
  %s13 = inlined_call_operand.vmem [shape: f32[1,128], index: 13, kind: input, shape index: {}]
  %s14 = inlined_call_operand.hbm [shape: f32[8,128], index: 14, kind: output, shape index: {0}]
  %s15 = inlined_call_operand.hbm [shape: f32[8,128], index: 15, kind: output, shape index: {1}]
  %s16 = inlined_call_operand.hbm [shape: f32[1,1], index: 16, kind: output, shape index: {2}]
  %17 = xla_tuple %s14, %s15, %s16
  %s18 = sld [smem:[#allocation0]]
  $region106: #{tpu_custom_call.1} parent=0
    _
  %s20 = ssub.s32 1, %s18
  %s21 = scalar_select 0, %s20, %s18
  $region1: #{tpu_custom_call.1} parent=0
    #allocation2 [shape = 'u8[4096]{0}', space=vmem, size = 0x1000, scoped, tag = 'input window, operand 0, single buffered']
    #allocation3 [shape = 's32[1]{0}', space=sflag, size = 0x4, scoped, tag = 'scoped memory for tpu_custom_call.1']
    #allocation4 [shape = 's32[1]{0}', space=sflag, size = 0x4, scoped, tag = 'scoped memory for tpu_custom_call.1']
    #allocation5 [shape = 's32[1]{0}', space=sflag, size = 0x4, scoped, tag = 'scoped memory for tpu_custom_call.1']
    #allocation6 [shape = 'u8[4096]{0}', space=vmem, size = 0x1000, scoped, tag = 'input window, operand 1, single buffered']
    #allocation7 [shape = 's32[1]{0}', space=sflag, size = 0x4, scoped, tag = 'scoped memory for tpu_custom_call.1']
    #allocation8 [shape = 'u8[16384]{0}', space=vmem, size = 0x4000, scoped, tag = 'input window, operand 2, single buffered']
    #allocation9 [shape = 'u8[65536]{0}', space=vmem, size = 0x10000, scoped, tag = 'input window, operand 4, single buffered']
    #allocation10 [shape = 's32[1]{0}', space=sflag, size = 0x4, scoped, tag = 'scoped memory for tpu_custom_call.1']
    #allocation11 [shape = 'u8[32768]{0}', space=vmem, size = 0x8000, scoped, tag = 'input window, operand 8, single buffered']
    #allocation12 [shape = 'u8[65536]{0}', space=vmem, size = 0x10000, scoped, tag = 'input window, operand 10, single buffered']
    #allocation13 [shape = 's32[1]{0}', space=sflag, size = 0x4, scoped, tag = 'scoped memory for tpu_custom_call.1']
    #allocation14 [shape = 'u8[4096]{0}', space=vmem, size = 0x1000, scoped, tag = 'output window, operand 0, single buffered']
    #allocation15 [shape = 'u8[4096]{0}', space=vmem, size = 0x1000, scoped, tag = 'output window, operand 1, single buffered']
    #allocation16 [shape = 's32[1]{0}', space=sflag, size = 0x4, scoped, tag = 'scoped memory for tpu_custom_call.1']
    #allocation17 [shape = 'u8[512]{0}', space=smem, size = 0x200, scoped, tag = 'output window, operand 2, single buffered']
    %22 = vsyncpa [#allocation3], 0
    %23 = vsyncpa [#allocation7], 0
    %24 = vsyncpa [#allocation10], 0
    %25 = vsyncpa [#allocation13], 0
    %26 = vsyncpa [#allocation4], 0
    %27 = vsyncpa [#allocation16], 0
    %28 = vsyncpa [#allocation5], 0
    // Predicated region
    $region2: #{tpu_custom_call.1} parent=1 // pred_check
      _
    $region3: #{tpu_custom_call.1} parent=1 // pred_check_branch
      %30 = sbr.rel (0) target = $region5
    $region4: #{tpu_custom_call.1} parent=1 // pred_region
      %s32 = ssub.s32 128, 128
      %33 = vsyncadd [#allocation3], %s32
      %s35 = sshll.u32 [#allocation2], 4
      %s36 = int_to_ptr.vmem [resolvable:$true] %s35
      %38 = dma.hbm_to_vmem [thread:$0]  %s0, 128, %s36, [#allocation3]
    $region5: #{tpu_custom_call.1} parent=1 // pred_fallthru
      _
    // Predicated region
    $region6: #{tpu_custom_call.1} parent=1 // pred_check
      _
    $region7: #{tpu_custom_call.1} parent=1 // pred_check_branch
      %40 = sbr.rel (0) target = $region9
    $region8: #{tpu_custom_call.1} parent=1 // pred_region
      %s42 = ssub.s32 128, 128
      %43 = vsyncadd [#allocation7], %s42
      %s45 = sshll.u32 [#allocation6], 4
      %s46 = int_to_ptr.vmem [resolvable:$true] %s45
      %48 = dma.hbm_to_vmem [thread:$0]  %s1, 128, %s46, [#allocation7]
    $region9: #{tpu_custom_call.1} parent=1 // pred_fallthru
      _
    // Predicated region
    $region10: #{tpu_custom_call.1} parent=1 // pred_check
      _
    $region11: #{tpu_custom_call.1} parent=1 // pred_check_branch
      %50 = sbr.rel (0) target = $region13
    $region12: #{tpu_custom_call.1} parent=1 // pred_region
      %s52 = ssub.s32 512, 512
      %53 = vsyncadd [#allocation7], %s52
      %s54 = sshll.u32 [#allocation8], 4
      %s55 = int_to_ptr.vmem [resolvable:$true] %s54
      %60 = dma.hbm_to_vmem [thread:$0]  %s2, 512, %s55, [#allocation7], 128, 128, 8
    $region13: #{tpu_custom_call.1} parent=1 // pred_fallthru
      _
    // Predicated region
    $region14: #{tpu_custom_call.1} parent=1 // pred_check
      _
    $region15: #{tpu_custom_call.1} parent=1 // pred_check_branch
      %62 = sbr.rel (0) target = $region17
    $region16: #{tpu_custom_call.1} parent=1 // pred_region
      _
    $region17: #{tpu_custom_call.1} parent=1 // pred_fallthru
      _
    // Predicated region
    $region18: #{tpu_custom_call.1} parent=1 // pred_check
      _
    $region19: #{tpu_custom_call.1} parent=1 // pred_check_branch
      %64 = sbr.rel (0) target = $region21
    $region20: #{tpu_custom_call.1} parent=1 // pred_region
      %s66 = ssub.s32 2048, 2048
      %67 = vsyncadd [#allocation10], %s66
      %s68 = sshll.u32 [#allocation9], 4
      %s69 = int_to_ptr.vmem [resolvable:$true] %s68
      %74 = dma.hbm_to_vmem [thread:$0]  %s4, 2048, %s69, [#allocation10], 128, 128, 8
    $region21: #{tpu_custom_call.1} parent=1 // pred_fallthru
      _
    // Predicated region
    $region22: #{tpu_custom_call.1} parent=1 // pred_check
      _
    $region23: #{tpu_custom_call.1} parent=1 // pred_check_branch
      %76 = sbr.rel (0) target = $region25
    $region24: #{tpu_custom_call.1} parent=1 // pred_region
      _
    $region25: #{tpu_custom_call.1} parent=1 // pred_fallthru
      _
    // Predicated region
    $region26: #{tpu_custom_call.1} parent=1 // pred_check
      _
    $region27: #{tpu_custom_call.1} parent=1 // pred_check_branch
      %78 = sbr.rel (0) target = $region29
    $region28: #{tpu_custom_call.1} parent=1 // pred_region
      _
    $region29: #{tpu_custom_call.1} parent=1 // pred_fallthru
      _
    // Predicated region
    $region30: #{tpu_custom_call.1} parent=1 // pred_check
      _
    $region31: #{tpu_custom_call.1} parent=1 // pred_check_branch
      %80 = sbr.rel (0) target = $region33
    $region32: #{tpu_custom_call.1} parent=1 // pred_region
      _
    $region33: #{tpu_custom_call.1} parent=1 // pred_fallthru
      _
    // Predicated region
    $region34: #{tpu_custom_call.1} parent=1 // pred_check
      _
    $region35: #{tpu_custom_call.1} parent=1 // pred_check_branch
      %82 = sbr.rel (0) target = $region37
    $region36: #{tpu_custom_call.1} parent=1 // pred_region
      %s84 = ssub.s32 1024, 1024
      %85 = vsyncadd [#allocation10], %s84
      %s86 = sshll.u32 [#allocation11], 4
      %s87 = int_to_ptr.vmem [resolvable:$true] %s86
      %92 = dma.hbm_to_vmem [thread:$0]  %s8, 1024, %s87, [#allocation10], 128, 128, 8
    $region37: #{tpu_custom_call.1} parent=1 // pred_fallthru
      _
    // Predicated region
    $region38: #{tpu_custom_call.1} parent=1 // pred_check
      _
    $region39: #{tpu_custom_call.1} parent=1 // pred_check_branch
      %94 = sbr.rel (0) target = $region41
    $region40: #{tpu_custom_call.1} parent=1 // pred_region
      _
    $region41: #{tpu_custom_call.1} parent=1 // pred_fallthru
      _
    // Predicated region
    $region42: #{tpu_custom_call.1} parent=1 // pred_check
      _
    $region43: #{tpu_custom_call.1} parent=1 // pred_check_branch
      %96 = sbr.rel (0) target = $region45
    $region44: #{tpu_custom_call.1} parent=1 // pred_region
      %s98 = ssub.s32 2048, 2048
      %99 = vsyncadd [#allocation13], %s98
      %s100 = sshll.u32 [#allocation12], 4
      %s101 = int_to_ptr.vmem [resolvable:$true] %s100
      %106 = dma.hbm_to_vmem [thread:$0]  %s10, 2048, %s101, [#allocation13], 128, 128, 8
    $region45: #{tpu_custom_call.1} parent=1 // pred_fallthru
      _
    // Predicated region
    $region46: #{tpu_custom_call.1} parent=1 // pred_check
      _
    $region47: #{tpu_custom_call.1} parent=1 // pred_check_branch
      %108 = sbr.rel (0) target = $region49
    $region48: #{tpu_custom_call.1} parent=1 // pred_region
      _
    $region49: #{tpu_custom_call.1} parent=1 // pred_fallthru
      _
    // Predicated region
    $region50: #{tpu_custom_call.1} parent=1 // pred_check
      _
    $region51: #{tpu_custom_call.1} parent=1 // pred_check_branch
      %110 = sbr.rel (0) target = $region53
    $region52: #{tpu_custom_call.1} parent=1 // pred_region
      _
    $region53: #{tpu_custom_call.1} parent=1 // pred_fallthru
      _
    // Predicated region
    $region54: #{tpu_custom_call.1} parent=1 // pred_check
      _
    $region55: #{tpu_custom_call.1} parent=1 // pred_check_branch
      %112 = sbr.rel (0) target = $region57
    $region56: #{tpu_custom_call.1} parent=1 // pred_region
      _
    $region57: #{tpu_custom_call.1} parent=1 // pred_fallthru
      _
    // Predicated region
    $region58: #{tpu_custom_call.1} parent=1 // pred_check
      _
    $region59: #{tpu_custom_call.1} parent=1 // pred_check_branch
      %114 = sbr.rel (0) target = $region61
    $region60: #{tpu_custom_call.1} parent=1 // pred_region
      %115 = dma.done [#allocation3], 128
    $region61: #{tpu_custom_call.1} parent=1 // pred_fallthru
      _
    // Predicated region
    $region62: #{tpu_custom_call.1} parent=1 // pred_check
      _
    $region63: #{tpu_custom_call.1} parent=1 // pred_check_branch
      %117 = sbr.rel (0) target = $region65
    $region64: #{tpu_custom_call.1} parent=1 // pred_region
      %118 = dma.done [#allocation7], 128
    $region65: #{tpu_custom_call.1} parent=1 // pred_fallthru
      _
    // Predicated region
    $region66: #{tpu_custom_call.1} parent=1 // pred_check
      _
    $region67: #{tpu_custom_call.1} parent=1 // pred_check_branch
      %120 = sbr.rel (0) target = $region69
    $region68: #{tpu_custom_call.1} parent=1 // pred_region
      %121 = dma.done [#allocation7], 512
    $region69: #{tpu_custom_call.1} parent=1 // pred_fallthru
      _
    // Predicated region
    $region70: #{tpu_custom_call.1} parent=1 // pred_check
      _
    $region71: #{tpu_custom_call.1} parent=1 // pred_check_branch
      %123 = sbr.rel (0) target = $region73
    $region72: #{tpu_custom_call.1} parent=1 // pred_region
      %124 = dma.done [#allocation10], 2048
    $region73: #{tpu_custom_call.1} parent=1 // pred_fallthru
      _
    // Predicated region
    $region74: #{tpu_custom_call.1} parent=1 // pred_check
      _
    $region75: #{tpu_custom_call.1} parent=1 // pred_check_branch
      %126 = sbr.rel (0) target = $region77
    $region76: #{tpu_custom_call.1} parent=1 // pred_region
      %127 = dma.done [#allocation10], 1024
    $region77: #{tpu_custom_call.1} parent=1 // pred_fallthru
      _
    // Predicated region
    $region78: #{tpu_custom_call.1} parent=1 // pred_check
      _
    $region79: #{tpu_custom_call.1} parent=1 // pred_check_branch
      %129 = sbr.rel (0) target = $region81
    $region80: #{tpu_custom_call.1} parent=1 // pred_region
      %130 = dma.done [#allocation13], 2048
    $region81: #{tpu_custom_call.1} parent=1 // pred_fallthru
      _
    %v131 = vld [vmem:[#allocation2] sm:$0xff]
    %v132 = vld [vmem:[#allocation8] sm:$0xff]
    %v133 = vld [vmem:[#allocation8 + $0x8] sm:$0xff]
    %v134 = vld [vmem:[#allocation8 + $0x10] sm:$0xff]
    %v135 = vld [vmem:[#allocation8 + $0x18] sm:$0xff]
    %v136 = vld [vmem:[%s3] sm:$0x1]
    %v137 = vld [vmem:[#allocation9] sm:$0xff]
    %v138 = vld [vmem:[#allocation9 + $0x8] sm:$0xff]
    %v139 = vld [vmem:[#allocation9 + $0x10] sm:$0xff]
    %v140 = vld [vmem:[#allocation9 + $0x18] sm:$0xff]
    %v141 = vld [vmem:[#allocation9 + $0x20] sm:$0xff]
    %v142 = vld [vmem:[#allocation9 + $0x28] sm:$0xff]
    %v143 = vld [vmem:[#allocation9 + $0x30] sm:$0xff]
    %v144 = vld [vmem:[#allocation9 + $0x38] sm:$0xff]
    %v145 = vld [vmem:[#allocation9 + $0x40] sm:$0xff]
    %v146 = vld [vmem:[#allocation9 + $0x48] sm:$0xff]
    %v147 = vld [vmem:[#allocation9 + $0x50] sm:$0xff]
    %v148 = vld [vmem:[#allocation9 + $0x58] sm:$0xff]
    %v149 = vld [vmem:[#allocation9 + $0x60] sm:$0xff]
    %v150 = vld [vmem:[#allocation9 + $0x68] sm:$0xff]
    %v151 = vld [vmem:[#allocation9 + $0x70] sm:$0xff]
    %v152 = vld [vmem:[#allocation9 + $0x78] sm:$0xff]
    %v153 = vld [vmem:[%s5] sm:$0x1]
    %v154 = vld [vmem:[%s6] sm:$0x1]
    %v155 = vld [vmem:[%s7] sm:$0x1]
    %v157 = vlaneseq
    %v158 = vshrl.u32 %v157, 7
    %v159 = vsub.s32 0, %v158
    %v160 = vrot.slane %v136, %v159
    %vm162 = vcmask 261120
    %v164 = vsel %vm162, %v131, 0
    %166 = vmatprep.subr.mxu0 0.0
    %167 = vmatpush1.msra.mxu0 %v132
    %168 = vmatprep.subr.mxu0 0.0
    %169 = vmatpush1.msra.mxu0 %v133
    %170 = vmatprep.subr.mxu0 0.0
    %171 = vmatpush1.msra.mxu0 %v134
    %172 = vmatprep.subr.mxu0 0.0
    %173 = vmatpush1.msra.mxu0 %v135
    %174 = vmatprep.subr.mxu0 0.0
    %175 = vmatpush1.msra.mxu0 0.0
    %176 = vmatprep.subr.mxu0 0.0
    %177 = vmatpush1.msra.mxu0 0.0
    %178 = vmatprep.subr.mxu0 0.0
    %179 = vmatpush1.msra.mxu0 0.0
    %180 = vmatprep.subr.mxu0 0.0
    %181 = vmatpush1.msra.mxu0 0.0
    %182 = vmatprep.subr.mxu0 0.0
    %183 = vmatpush1.msra.mxu0 0.0
    %184 = vmatprep.subr.mxu0 0.0
    %185 = vmatpush1.msra.mxu0 0.0
    %186 = vmatprep.subr.mxu0 0.0
    %187 = vmatpush1.msra.mxu0 0.0
    %188 = vmatprep.subr.mxu0 0.0
    %189 = vmatpush1.msra.mxu0 0.0
    %190 = vmatprep.subr.mxu0 0.0
    %191 = vmatpush1.msra.mxu0 0.0
    %192 = vmatprep.subr.mxu0 0.0
    %193 = vmatpush1.msra.mxu0 0.0
    %194 = vmatprep.subr.mxu0 0.0
    %195 = vmatpush1.msra.mxu0 0.0
    %196 = vmatprep.subr.mxu0 0.0
    %197 = vmatpush1.msra.mxu0 0.0
    %198 = vmatprep.subr.mxu0 0.0
    %199 = vmatpush1.msra.mxu0 0.0
    %200 = vmatprep.subr.mxu0 0.0
    %201 = vmatpush1.msra.mxu0 0.0
    %202 = vmatprep.subr.mxu0 0.0
    %203 = vmatpush1.msra.mxu0 0.0
    %204 = vmatprep.subr.mxu0 0.0
    %205 = vmatpush1.msra.mxu0 0.0
    %206 = vmatprep.subr.mxu0 0.0
    %207 = vmatpush1.msra.mxu0 0.0
    %208 = vmatprep.subr.mxu0 0.0
    %209 = vmatpush1.msra.mxu0 0.0
    %210 = vmatprep.subr.mxu0 0.0
    %211 = vmatpush1.msra.mxu0 0.0
    %212 = vmatprep.subr.mxu0 0.0
    %213 = vmatpush1.msra.mxu0 0.0
    %214 = vmatprep.subr.mxu0 0.0
    %215 = vmatpush1.msra.mxu0 0.0
    %216 = vmatprep.subr.mxu0 0.0
    %217 = vmatpush1.msra.mxu0 0.0
    %218 = vmatprep.subr.mxu0 0.0
    %219 = vmatpush1.msra.mxu0 0.0
    %220 = vmatprep.subr.mxu0 0.0
    %221 = vmatpush1.msra.mxu0 0.0
    %222 = vmatprep.subr.mxu0 0.0
    %223 = vmatpush1.msra.mxu0 0.0
    %224 = vmatprep.subr.mxu0 0.0
    %225 = vmatpush1.msra.mxu0 0.0
    %226 = vmatprep.subr.mxu0 0.0
    %227 = vmatpush1.msra.mxu0 0.0
    %228 = vmatprep.subr.mxu0 0.0
    %229 = vmatpush1.msra.mxu0 0.0
    %230 = vmatprep.mubr.f32.mxu0 0.0
    %231 = vmatmul.mubr.f32.gmra.mrb[0].mxu0 %v164
    %v232 = vpop.f32.mrb[0].mxu0
    %v233 = vadd.f32 %v160, %v232
    %v234 = vpop.f32.mrb[0].mxu0
    %235 = vdwg.mxu0
    %v236 = vmax.f32 %v233, 0.0
    %v238 = vlaneseq
    %v239 = vshrl.u32 %v238, 7
    %v240 = vsub.s32 0, %v239
    %v241 = vrot.slane %v153, %v240
    %243 = vmatprep.subr.mxu0 0.0
    %244 = vmatpush1.msra.mxu0 %v137
    %245 = vmatprep.subr.mxu0 0.0
    %246 = vmatpush1.msra.mxu0 %v138
    %247 = vmatprep.subr.mxu0 0.0
    %248 = vmatpush1.msra.mxu0 %v139
    %249 = vmatprep.subr.mxu0 0.0
    %250 = vmatpush1.msra.mxu0 %v140
    %251 = vmatprep.subr.mxu0 0.0
    %252 = vmatpush1.msra.mxu0 %v141
    %253 = vmatprep.subr.mxu0 0.0
    %254 = vmatpush1.msra.mxu0 %v142
    %255 = vmatprep.subr.mxu0 0.0
    %256 = vmatpush1.msra.mxu0 %v143
    %257 = vmatprep.subr.mxu0 0.0
    %258 = vmatpush1.msra.mxu0 %v144
    %259 = vmatprep.subr.mxu0 0.0
    %260 = vmatpush1.msra.mxu0 %v145
    %261 = vmatprep.subr.mxu0 0.0
    %262 = vmatpush1.msra.mxu0 %v146
    %263 = vmatprep.subr.mxu0 0.0
    %264 = vmatpush1.msra.mxu0 %v147
    %265 = vmatprep.subr.mxu0 0.0
    %266 = vmatpush1.msra.mxu0 %v148
    %267 = vmatprep.subr.mxu0 0.0
    %268 = vmatpush1.msra.mxu0 %v149
    %269 = vmatprep.subr.mxu0 0.0
    %270 = vmatpush1.msra.mxu0 %v150
    %271 = vmatprep.subr.mxu0 0.0
    %272 = vmatpush1.msra.mxu0 %v151
    %273 = vmatprep.subr.mxu0 0.0
    %274 = vmatpush1.msra.mxu0 %v152
    %275 = vmatprep.subr.mxu0 0.0
    %276 = vmatpush1.msra.mxu0 0.0
    %277 = vmatprep.subr.mxu0 0.0
    %278 = vmatpush1.msra.mxu0 0.0
    %279 = vmatprep.subr.mxu0 0.0
    %280 = vmatpush1.msra.mxu0 0.0
    %281 = vmatprep.subr.mxu0 0.0
    %282 = vmatpush1.msra.mxu0 0.0
    %283 = vmatprep.subr.mxu0 0.0
    %284 = vmatpush1.msra.mxu0 0.0
    %285 = vmatprep.subr.mxu0 0.0
    %286 = vmatpush1.msra.mxu0 0.0
    %287 = vmatprep.subr.mxu0 0.0
    %288 = vmatpush1.msra.mxu0 0.0
    %289 = vmatprep.subr.mxu0 0.0
    %290 = vmatpush1.msra.mxu0 0.0
    %291 = vmatprep.subr.mxu0 0.0
    %292 = vmatpush1.msra.mxu0 0.0
    %293 = vmatprep.subr.mxu0 0.0
    %294 = vmatpush1.msra.mxu0 0.0
    %295 = vmatprep.subr.mxu0 0.0
    %296 = vmatpush1.msra.mxu0 0.0
    %297 = vmatprep.subr.mxu0 0.0
    %298 = vmatpush1.msra.mxu0 0.0
    %299 = vmatprep.subr.mxu0 0.0
    %300 = vmatpush1.msra.mxu0 0.0
    %301 = vmatprep.subr.mxu0 0.0
    %302 = vmatpush1.msra.mxu0 0.0
    %303 = vmatprep.subr.mxu0 0.0
    %304 = vmatpush1.msra.mxu0 0.0
    %305 = vmatprep.subr.mxu0 0.0
    %306 = vmatpush1.msra.mxu0 0.0
    %307 = vmatprep.mubr.f32.mxu0 0.0
    %308 = vmatmul.mubr.f32.gmra.mrb[0].mxu0 %v236
    %v309 = vpop.f32.mrb[0].mxu0
    %v310 = vadd.f32 %v241, %v309
    %v311 = vpop.f32.mrb[0].mxu0
    %312 = vdwg.mxu0
    %v313 = vadd.f32 %v310, %v233
    %314 = vadd.xlane.f32.xlu0 %v313
    %v315 = vpop.xlane.xlu0 %314
    %v316 = vrcp.pop 128.0
    %v317 = vmul.f32 %v315, %v316
    %v318 = vsub.f32 %v313, %v317
    %v319 = vmul.f32 %v318, %v318
    %320 = vadd.xlane.f32.xlu0 %v319
    %v321 = vpop.xlane.xlu0 %320
    %v322 = vmul.f32 %v321, %v316
    %v323 = vadd.f32 %v322, 1e-05
    %v324 = vrsqrt.pop %v323
    %v325 = vmul.f32 %v318, %v324
    %v327 = vlaneseq
    %v328 = vshrl.u32 %v327, 7
    %v329 = vsub.s32 0, %v328
    %v330 = vrot.slane %v154, %v329
    %v332 = vmul.f32 %v325, %v330
    %v334 = vlaneseq
    %v335 = vshrl.u32 %v334, 7
    %v336 = vsub.s32 0, %v335
    %v337 = vrot.slane %v155, %v336
    %v339 = vadd.f32 %v332, %v337
    %v340 = vld [vmem:[#allocation6] sm:$0xff]
    %v341 = vld [vmem:[#allocation11] sm:$0xff]
    %v342 = vld [vmem:[#allocation11 + $0x8] sm:$0xff]
    %v343 = vld [vmem:[#allocation11 + $0x10] sm:$0xff]
    %v344 = vld [vmem:[#allocation11 + $0x18] sm:$0xff]
    %v345 = vld [vmem:[#allocation11 + $0x20] sm:$0xff]
    %v346 = vld [vmem:[#allocation11 + $0x28] sm:$0xff]
    %v347 = vld [vmem:[#allocation11 + $0x30] sm:$0xff]
    %v348 = vld [vmem:[#allocation11 + $0x38] sm:$0xff]
    %v349 = vld [vmem:[%s9] sm:$0x1]
    %v350 = vld [vmem:[#allocation12] sm:$0xff]
    %v351 = vld [vmem:[#allocation12 + $0x8] sm:$0xff]
    %v352 = vld [vmem:[#allocation12 + $0x10] sm:$0xff]
    %v353 = vld [vmem:[#allocation12 + $0x18] sm:$0xff]
    %v354 = vld [vmem:[#allocation12 + $0x20] sm:$0xff]
    %v355 = vld [vmem:[#allocation12 + $0x28] sm:$0xff]
    %v356 = vld [vmem:[#allocation12 + $0x30] sm:$0xff]
    %v357 = vld [vmem:[#allocation12 + $0x38] sm:$0xff]
    %v358 = vld [vmem:[#allocation12 + $0x40] sm:$0xff]
    %v359 = vld [vmem:[#allocation12 + $0x48] sm:$0xff]
    %v360 = vld [vmem:[#allocation12 + $0x50] sm:$0xff]
    %v361 = vld [vmem:[#allocation12 + $0x58] sm:$0xff]
    %v362 = vld [vmem:[#allocation12 + $0x60] sm:$0xff]
    %v363 = vld [vmem:[#allocation12 + $0x68] sm:$0xff]
    %v364 = vld [vmem:[#allocation12 + $0x70] sm:$0xff]
    %v365 = vld [vmem:[#allocation12 + $0x78] sm:$0xff]
    %v366 = vld [vmem:[%s11] sm:$0x1]
    %v367 = vld [vmem:[%s12] sm:$0x1]
    %v368 = vld [vmem:[%s13] sm:$0x1]
    %v370 = vlaneseq
    %v371 = vshrl.u32 %v370, 7
    %v372 = vsub.s32 0, %v371
    %v373 = vrot.slane %v349, %v372
    %vm375 = vcmask 523264
    %v377 = vsel %vm375, %v340, 0
    %379 = vmatprep.subr.mxu0 0.0
    %380 = vmatpush1.msra.mxu0 %v341
    %381 = vmatprep.subr.mxu0 0.0
    %382 = vmatpush1.msra.mxu0 %v342
    %383 = vmatprep.subr.mxu0 0.0
    %384 = vmatpush1.msra.mxu0 %v343
    %385 = vmatprep.subr.mxu0 0.0
    %386 = vmatpush1.msra.mxu0 %v344
    %387 = vmatprep.subr.mxu0 0.0
    %388 = vmatpush1.msra.mxu0 %v345
    %389 = vmatprep.subr.mxu0 0.0
    %390 = vmatpush1.msra.mxu0 %v346
    %391 = vmatprep.subr.mxu0 0.0
    %392 = vmatpush1.msra.mxu0 %v347
    %393 = vmatprep.subr.mxu0 0.0
    %394 = vmatpush1.msra.mxu0 %v348
    %395 = vmatprep.subr.mxu0 0.0
    %396 = vmatpush1.msra.mxu0 0.0
    %397 = vmatprep.subr.mxu0 0.0
    %398 = vmatpush1.msra.mxu0 0.0
    %399 = vmatprep.subr.mxu0 0.0
    %400 = vmatpush1.msra.mxu0 0.0
    %401 = vmatprep.subr.mxu0 0.0
    %402 = vmatpush1.msra.mxu0 0.0
    %403 = vmatprep.subr.mxu0 0.0
    %404 = vmatpush1.msra.mxu0 0.0
    %405 = vmatprep.subr.mxu0 0.0
    %406 = vmatpush1.msra.mxu0 0.0
    %407 = vmatprep.subr.mxu0 0.0
    %408 = vmatpush1.msra.mxu0 0.0
    %409 = vmatprep.subr.mxu0 0.0
    %410 = vmatpush1.msra.mxu0 0.0
    %411 = vmatprep.subr.mxu0 0.0
    %412 = vmatpush1.msra.mxu0 0.0
    %413 = vmatprep.subr.mxu0 0.0
    %414 = vmatpush1.msra.mxu0 0.0
    %415 = vmatprep.subr.mxu0 0.0
    %416 = vmatpush1.msra.mxu0 0.0
    %417 = vmatprep.subr.mxu0 0.0
    %418 = vmatpush1.msra.mxu0 0.0
    %419 = vmatprep.subr.mxu0 0.0
    %420 = vmatpush1.msra.mxu0 0.0
    %421 = vmatprep.subr.mxu0 0.0
    %422 = vmatpush1.msra.mxu0 0.0
    %423 = vmatprep.subr.mxu0 0.0
    %424 = vmatpush1.msra.mxu0 0.0
    %425 = vmatprep.subr.mxu0 0.0
    %426 = vmatpush1.msra.mxu0 0.0
    %427 = vmatprep.subr.mxu0 0.0
    %428 = vmatpush1.msra.mxu0 0.0
    %429 = vmatprep.subr.mxu0 0.0
    %430 = vmatpush1.msra.mxu0 0.0
    %431 = vmatprep.subr.mxu0 0.0
    %432 = vmatpush1.msra.mxu0 0.0
    %433 = vmatprep.subr.mxu0 0.0
    %434 = vmatpush1.msra.mxu0 0.0
    %435 = vmatprep.subr.mxu0 0.0
    %436 = vmatpush1.msra.mxu0 0.0
    %437 = vmatprep.subr.mxu0 0.0
    %438 = vmatpush1.msra.mxu0 0.0
    %439 = vmatprep.subr.mxu0 0.0
    %440 = vmatpush1.msra.mxu0 0.0
    %441 = vmatprep.subr.mxu0 0.0
    %442 = vmatpush1.msra.mxu0 0.0
    %443 = vmatprep.mubr.f32.mxu0 0.0
    %444 = vmatmul.mubr.f32.gmra.mrb[0].mxu0 %v377
    %v445 = vpop.f32.mrb[0].mxu0
    %v446 = vadd.f32 %v373, %v445
    %v447 = vpop.f32.mrb[0].mxu0
    %448 = vdwg.mxu0
    %v449 = vmax.f32 %v446, 0.0
    %v451 = vlaneseq
    %v452 = vshrl.u32 %v451, 7
    %v453 = vsub.s32 0, %v452
    %v454 = vrot.slane %v366, %v453
    %456 = vmatprep.subr.mxu0 0.0
    %457 = vmatpush1.msra.mxu0 %v350
    %458 = vmatprep.subr.mxu0 0.0
    %459 = vmatpush1.msra.mxu0 %v351
    %460 = vmatprep.subr.mxu0 0.0
    %461 = vmatpush1.msra.mxu0 %v352
    %462 = vmatprep.subr.mxu0 0.0
    %463 = vmatpush1.msra.mxu0 %v353
    %464 = vmatprep.subr.mxu0 0.0
    %465 = vmatpush1.msra.mxu0 %v354
    %466 = vmatprep.subr.mxu0 0.0
    %467 = vmatpush1.msra.mxu0 %v355
    %468 = vmatprep.subr.mxu0 0.0
    %469 = vmatpush1.msra.mxu0 %v356
    %470 = vmatprep.subr.mxu0 0.0
    %471 = vmatpush1.msra.mxu0 %v357
    %472 = vmatprep.subr.mxu0 0.0
    %473 = vmatpush1.msra.mxu0 %v358
    %474 = vmatprep.subr.mxu0 0.0
    %475 = vmatpush1.msra.mxu0 %v359
    %476 = vmatprep.subr.mxu0 0.0
    %477 = vmatpush1.msra.mxu0 %v360
    %478 = vmatprep.subr.mxu0 0.0
    %479 = vmatpush1.msra.mxu0 %v361
    %480 = vmatprep.subr.mxu0 0.0
    %481 = vmatpush1.msra.mxu0 %v362
    %482 = vmatprep.subr.mxu0 0.0
    %483 = vmatpush1.msra.mxu0 %v363
    %484 = vmatprep.subr.mxu0 0.0
    %485 = vmatpush1.msra.mxu0 %v364
    %486 = vmatprep.subr.mxu0 0.0
    %487 = vmatpush1.msra.mxu0 %v365
    %488 = vmatprep.subr.mxu0 0.0
    %489 = vmatpush1.msra.mxu0 0.0
    %490 = vmatprep.subr.mxu0 0.0
    %491 = vmatpush1.msra.mxu0 0.0
    %492 = vmatprep.subr.mxu0 0.0
    %493 = vmatpush1.msra.mxu0 0.0
    %494 = vmatprep.subr.mxu0 0.0
    %495 = vmatpush1.msra.mxu0 0.0
    %496 = vmatprep.subr.mxu0 0.0
    %497 = vmatpush1.msra.mxu0 0.0
    %498 = vmatprep.subr.mxu0 0.0
    %499 = vmatpush1.msra.mxu0 0.0
    %500 = vmatprep.subr.mxu0 0.0
    %501 = vmatpush1.msra.mxu0 0.0
    %502 = vmatprep.subr.mxu0 0.0
    %503 = vmatpush1.msra.mxu0 0.0
    %504 = vmatprep.subr.mxu0 0.0
    %505 = vmatpush1.msra.mxu0 0.0
    %506 = vmatprep.subr.mxu0 0.0
    %507 = vmatpush1.msra.mxu0 0.0
    %508 = vmatprep.subr.mxu0 0.0
    %509 = vmatpush1.msra.mxu0 0.0
    %510 = vmatprep.subr.mxu0 0.0
    %511 = vmatpush1.msra.mxu0 0.0
    %512 = vmatprep.subr.mxu0 0.0
    %513 = vmatpush1.msra.mxu0 0.0
    %514 = vmatprep.subr.mxu0 0.0
    %515 = vmatpush1.msra.mxu0 0.0
    %516 = vmatprep.subr.mxu0 0.0
    %517 = vmatpush1.msra.mxu0 0.0
    %518 = vmatprep.subr.mxu0 0.0
    %519 = vmatpush1.msra.mxu0 0.0
    %520 = vmatprep.mubr.f32.mxu0 0.0
    %521 = vmatmul.mubr.f32.gmra.mrb[0].mxu0 %v449
    %v522 = vpop.f32.mrb[0].mxu0
    %v523 = vadd.f32 %v454, %v522
    %v524 = vpop.f32.mrb[0].mxu0
    %525 = vdwg.mxu0
    %v526 = vadd.f32 %v523, %v446
    %527 = vadd.xlane.f32.xlu0 %v526
    %v528 = vpop.xlane.xlu0 %527
    %v529 = vmul.f32 %v528, %v316
    %v530 = vsub.f32 %v526, %v529
    %v531 = vmul.f32 %v530, %v530
    %532 = vadd.xlane.f32.xlu0 %v531
    %v533 = vpop.xlane.xlu0 %532
    %v534 = vmul.f32 %v533, %v316
    %v535 = vadd.f32 %v534, 1e-05
    %v536 = vrsqrt.pop %v535
    %v537 = vmul.f32 %v530, %v536
    %v539 = vlaneseq
    %v540 = vshrl.u32 %v539, 7
    %v541 = vsub.s32 0, %v540
    %v542 = vrot.slane %v367, %v541
    %v544 = vmul.f32 %v537, %v542
    %v546 = vlaneseq
    %v547 = vshrl.u32 %v546, 7
    %v548 = vsub.s32 0, %v547
    %v549 = vrot.slane %v368, %v548
    %v551 = vadd.f32 %v544, %v549
    %552 = vst [vmem:[#allocation14] sm:$0xff] %v339
    %553 = vst [vmem:[#allocation15] sm:$0xff] %v551
    %v554 = vmul.f32 %v551, %v551
    %555 = vadd.xlane.f32.xlu0 %v554
    %v556 = vpop.xlane.xlu0 %555
    %v557 = vrsqrt.pop %v556
    %v558 = vmul.f32 %v551, %v557
    %v559 = vmul.f32 %v339, %v339
    %560 = vadd.xlane.f32.xlu0 %v559
    %v561 = vpop.xlane.xlu0 %560
    %v562 = vrsqrt.pop %v561
    %v563 = vmul.f32 %v339, %v562
    %564 = vmatprep.subr.mxu0 0.0
    %565 = vmatpush1.xpose.msra.mxu0 %v563
    %566 = vmatprep.subr.mxu0 0.0
    %567 = vmatpush1.xpose.msra.mxu0 0.0
    %568 = vmatprep.subr.mxu0 0.0
    %569 = vmatpush1.xpose.msra.mxu0 0.0
    %570 = vmatprep.subr.mxu0 0.0
    %571 = vmatpush1.xpose.msra.mxu0 0.0
    %572 = vmatprep.subr.mxu0 0.0
    %573 = vmatpush1.xpose.msra.mxu0 0.0
    %574 = vmatprep.subr.mxu0 0.0
    %575 = vmatpush1.xpose.msra.mxu0 0.0
    %576 = vmatprep.subr.mxu0 0.0
    %577 = vmatpush1.xpose.msra.mxu0 0.0
    %578 = vmatprep.subr.mxu0 0.0
    %579 = vmatpush1.xpose.msra.mxu0 0.0
    %580 = vmatprep.subr.mxu0 0.0
    %581 = vmatpush1.xpose.msra.mxu0 0.0
    %582 = vmatprep.subr.mxu0 0.0
    %583 = vmatpush1.xpose.msra.mxu0 0.0
    %584 = vmatprep.subr.mxu0 0.0
    %585 = vmatpush1.xpose.msra.mxu0 0.0
    %586 = vmatprep.subr.mxu0 0.0
    %587 = vmatpush1.xpose.msra.mxu0 0.0
    %588 = vmatprep.subr.mxu0 0.0
    %589 = vmatpush1.xpose.msra.mxu0 0.0
    %590 = vmatprep.subr.mxu0 0.0
    %591 = vmatpush1.xpose.msra.mxu0 0.0
    %592 = vmatprep.subr.mxu0 0.0
    %593 = vmatpush1.xpose.msra.mxu0 0.0
    %594 = vmatprep.subr.mxu0 0.0
    %595 = vmatpush1.xpose.msra.mxu0 0.0
    %596 = vmatprep.subr.mxu0 0.0
    %597 = vmatpush1.xpose.msra.mxu0 0.0
    %598 = vmatprep.subr.mxu0 0.0
    %599 = vmatpush1.xpose.msra.mxu0 0.0
    %600 = vmatprep.subr.mxu0 0.0
    %601 = vmatpush1.xpose.msra.mxu0 0.0
    %602 = vmatprep.subr.mxu0 0.0
    %603 = vmatpush1.xpose.msra.mxu0 0.0
    %604 = vmatprep.subr.mxu0 0.0
    %605 = vmatpush1.xpose.msra.mxu0 0.0
    %606 = vmatprep.subr.mxu0 0.0
    %607 = vmatpush1.xpose.msra.mxu0 0.0
    %608 = vmatprep.subr.mxu0 0.0
    %609 = vmatpush1.xpose.msra.mxu0 0.0
    %610 = vmatprep.subr.mxu0 0.0
    %611 = vmatpush1.xpose.msra.mxu0 0.0
    %612 = vmatprep.subr.mxu0 0.0
    %613 = vmatpush1.xpose.msra.mxu0 0.0
    %614 = vmatprep.subr.mxu0 0.0
    %615 = vmatpush1.xpose.msra.mxu0 0.0
    %616 = vmatprep.subr.mxu0 0.0
    %617 = vmatpush1.xpose.msra.mxu0 0.0
    %618 = vmatprep.subr.mxu0 0.0
    %619 = vmatpush1.xpose.msra.mxu0 0.0
    %620 = vmatprep.subr.mxu0 0.0
    %621 = vmatpush1.xpose.msra.mxu0 0.0
    %622 = vmatprep.subr.mxu0 0.0
    %623 = vmatpush1.xpose.msra.mxu0 0.0
    %624 = vmatprep.subr.mxu0 0.0
    %625 = vmatpush1.xpose.msra.mxu0 0.0
    %626 = vmatprep.subr.mxu0 0.0
    %627 = vmatpush1.xpose.msra.mxu0 0.0
    %628 = vmatprep.mubr.f32.mxu0 0.0
    %629 = vmatmul.mubr.f32.gmra.mrb[0].mxu0 %v558
    %v630 = vpop.f32.mrb[0].mxu0
    %v631 = vadd.f32 0.0, %v630
    %v632 = vpop.f32.mrb[0].mxu0
    %633 = vdwg.mxu0
    %v634 = vmul.f32 %v631, 10.0
    %v635 = vmul.f32 %v558, %v563
    %636 = vadd.xlane.f32.xlu0 %v635
    %v637 = vpop.xlane.xlu0 %636
    %v638 = vmul.f32 %v637, 10.0
    %vm639 = vcmask 64512
    %v640 = vsel %vm639, %v634, -inf
    %641 = vmax.xlane.f32.xlu0 %v640
    %v642 = vpop.xlane.xlu0 %641
    %v643 = vsub.f32 %v634, %v642
    %v644 = vmul.f32 %v643, 1.442695
    %v645 = vpow.pop %v644
    %v646 = vsel %vm639, %v645, 0.0
    %647 = vadd.xlane.f32.xlu0 %v646
    %v648 = vpop.xlane.xlu0 %647
    %v649 = vlog2.pop %v648
    %v650 = vmul.f32 %v649, 0.6931472
    %v651 = vadd.f32 %v642, %v650
    %v652 = vsub.f32 %v651, %v638
    %vm653 = vcmask 7168
    %v654 = vsel %vm653, %v652, 0.0
    %655 = vadd.xlane.f32.xlu0 %v654
    %v656 = vpop.xlane.xlu0 %655
    %v657 = vrot.slane %v656, 4
    %v658 = vadd.f32 %v656, %v657
    %v659 = vrot.slane %v658, 2
    %v660 = vadd.f32 %v658, %v659
    %v661 = vrot.slane %v660, 1
    %v662 = vadd.f32 %v660, %v661
    %s663 = vtos %v662
    %v664 = vrcp.pop 8.0
    %s665 = vtos %v664
    %s666 = smul.f32 %s663, %s665
    %s667 = scalar_lea.smem [#allocation17], 0
    %668 = sst [smem:[%s667]] %s666
    // Predicated region
    $region82: #{tpu_custom_call.1} parent=1 // pred_check
      _
    $region83: #{tpu_custom_call.1} parent=1 // pred_check_branch
      %670 = sbr.rel (0) target = $region85
    $region84: #{tpu_custom_call.1} parent=1 // pred_region
      %s672 = ssub.s32 128, 128
      %673 = vsyncadd [#allocation4], %s672
      %s675 = sshll.u32 [#allocation14], 4
      %s676 = int_to_ptr.vmem [resolvable:$true] %s675
      %678 = dma.vmem_to_hbm [thread:$0]  %s676, 128, %s14, [#allocation4]
    $region85: #{tpu_custom_call.1} parent=1 // pred_fallthru
      _
    // Predicated region
    $region86: #{tpu_custom_call.1} parent=1 // pred_check
      _
    $region87: #{tpu_custom_call.1} parent=1 // pred_check_branch
      %680 = sbr.rel (0) target = $region89
    $region88: #{tpu_custom_call.1} parent=1 // pred_region
      %s682 = ssub.s32 128, 128
      %683 = vsyncadd [#allocation16], %s682
      %s685 = sshll.u32 [#allocation15], 4
      %s686 = int_to_ptr.vmem [resolvable:$true] %s685
      %688 = dma.vmem_to_hbm [thread:$0]  %s686, 128, %s15, [#allocation16]
    $region89: #{tpu_custom_call.1} parent=1 // pred_fallthru
      _
    // Predicated region
    $region90: #{tpu_custom_call.1} parent=1 // pred_check
      _
    $region91: #{tpu_custom_call.1} parent=1 // pred_check_branch
      %690 = sbr.rel (0) target = $region93
    $region92: #{tpu_custom_call.1} parent=1 // pred_region
      %s692 = ssub.s32 16, 16
      %693 = vsyncadd [#allocation5], %s692
      %696 = dma.smem_to_hbm [#allocation17], 16, %s16, [#allocation5]
    $region93: #{tpu_custom_call.1} parent=1 // pred_fallthru
      _
    // Predicated region
    $region94: #{tpu_custom_call.1} parent=1 // pred_check
      _
    $region95: #{tpu_custom_call.1} parent=1 // pred_check_branch
      %698 = sbr.rel (0) target = $region97
    $region96: #{tpu_custom_call.1} parent=1 // pred_region
      %699 = dma.done [#allocation4], 128
    $region97: #{tpu_custom_call.1} parent=1 // pred_fallthru
      _
    // Predicated region
    $region98: #{tpu_custom_call.1} parent=1 // pred_check
      _
    $region99: #{tpu_custom_call.1} parent=1 // pred_check_branch
      %701 = sbr.rel (0) target = $region101
    $region100: #{tpu_custom_call.1} parent=1 // pred_region
      %702 = dma.done [#allocation16], 128
    $region101: #{tpu_custom_call.1} parent=1 // pred_fallthru
      _
    // Predicated region
    $region102: #{tpu_custom_call.1} parent=1 // pred_check
      _
    $region103: #{tpu_custom_call.1} parent=1 // pred_check_branch
      %704 = sbr.rel (0) target = $region105
    $region104: #{tpu_custom_call.1} parent=1 // pred_region
      %705 = dma.done [#allocation5], 16
    $region105: #{tpu_custom_call.1} parent=1 // pred_fallthru
      _
    %706 = sfence
    %707 = vsyncpa [#allocation3], 1
    %708 = vsyncpa [#allocation7], 1
    %709 = vsyncpa [#allocation10], 1
    %710 = vsyncpa [#allocation13], 1
    %711 = vsyncpa [#allocation4], 1
    %712 = vsyncpa [#allocation16], 1
    %713 = vsyncpa [#allocation5], 1

</llo_original>
